<compile_context>
chip_gen: v7x
topology: tpu7x:2x2x1
jax: 0.10.0
libtpu: 0.0.40
codegen_flags: <defaults>
</compile_context>

<pallas_src>
import jax
import jax.numpy as jnp
from jax.experimental import pallas as pl
from jax.experimental.pallas import tpu as pltpu


def _round_up(x, m):
    return ((x + m - 1) // m) * m


def _cdiv(a, b):
    return -(-a // b)


def value_kernel(x_ref,
                 w1_ref, b1_ref,
                 w2_ref, b2_ref,
                 w3_ref, b3_ref,
                 wf1_ref, bf1_ref,
                 wf2_ref, bf2_ref,
                 wv_ref, bv_ref,
                 out_ref):
    def layer(h_bf16, w_ref, b_ref):
        # bf16 MXU matmul with f32 accumulation; bias + ReLU epilogue in f32
        # (v5e has no bf16 VALU path), then cast the carried activation to
        # bf16 so the inter-layer (TB, 256) intermediate is half-size.
        acc = jnp.dot(h_bf16, w_ref[...],
                      preferred_element_type=jnp.float32) + b_ref[...]
        return jnp.maximum(acc, 0.0).astype(jnp.bfloat16)

    h = x_ref[...].astype(jnp.bfloat16)       # (TB, C_in)
    h = layer(h, w1_ref, b1_ref)              # conv1 (kernel_size=1) + relu
    h = layer(h, w2_ref, b2_ref)              # conv2 + relu
    h = layer(h, w3_ref, b3_ref)              # conv3 + relu
    h = layer(h, wf1_ref, bf1_ref)            # fc1 + relu
    h = layer(h, wf2_ref, bf2_ref)            # fc2 + relu
    # Value head: VPU multiply + lane reduction (avoids an N=1 MXU matmul).
    v = jnp.sum(h.astype(jnp.float32) * wv_ref[...], axis=-1, keepdims=True)
    out_ref[...] = v + bv_ref[...]            # (TB, 1) f32


def value_forward(state, params, *, tb_max=1024):
    """state: (B, C_in) float32.  Returns (B, 1) float32 (as the PyTorch module)."""
    B, c_in = state.shape
    (w1, b1, w2, b2, w3, b3, wf1, bf1, wf2, bf2, wv, bv) = params
    weights = [w1, b1, w2, b2, w3, b3, wf1, bf1, wf2, bf2, wv, bv]
    assert w1.shape[0] == c_in

    # ---- batch tiling ------------------------------------------------------
    # Near-zero-pad tiles, <= tb_max rows, and >= 2 grid steps when the batch
    # is big enough to split so v7x's second TensorCore gets work.
    n_steps = max(1, _cdiv(B, tb_max))
    if B >= 16:
        n_steps = max(n_steps, 2)
    tb = _cdiv(B, n_steps)
    if n_steps > 1 or tb % 8 == 0:
        tb = _round_up(tb, 8)      # sublane-aligned tile; ragged last block ok
    # else: single block equal to the full batch dim (allowed even if B % 8 != 0)
    grid_steps = _cdiv(B, tb)

    x = state if state.dtype == jnp.float32 else state.astype(jnp.float32)

    def resident(a):
        # Full-array block with a constant block index -> DMA'd once and kept
        # in VMEM across all batch tiles.
        return pl.BlockSpec(a.shape, lambda i: (0, 0))

    rows = grid_steps * tb
    mm_weights = (w1, w2, w3, wf1, wf2)
    flops = 2 * rows * (sum(int(w.size) for w in mm_weights) + int(wv.size))
    weight_bytes = sum(int(a.size) * a.dtype.itemsize for a in weights)
    bytes_accessed = B * c_in * 4 + weight_bytes + B * 4

    out = pl.pallas_call(
        value_kernel,
        out_shape=jax.ShapeDtypeStruct((B, 1), jnp.float32),
        grid=(grid_steps,),
        in_specs=[pl.BlockSpec((tb, c_in), lambda i: (i, 0))]
                 + [resident(a) for a in weights],
        out_specs=pl.BlockSpec((tb, 1), lambda i: (i, 0)),
        compiler_params=pltpu.CompilerParams(
            dimension_semantics=("parallel",)),
        cost_estimate=pl.CostEstimate(
            flops=int(flops), transcendentals=0,
            bytes_accessed=int(bytes_accessed)),
    )(x, *weights)
    return out


def init_params(key, c_in, fc1_dims=256, fc2_dims=256):
    """PyTorch-style uniform(-1/sqrt(fan_in)) init.

    Matmul weights are stored pre-transposed as (in, out) in bf16; biases are
    f32 (1, out) rows for the f32 epilogue.  The value head is stored as an
    f32 (1, fc2_dims) row so the kernel can use a VPU mul + lane reduction.
    """
    def layer(k, fan_in, fan_out, w_dtype=jnp.bfloat16):
        kw, kb = jax.random.split(k)
        bound = 1.0 / jnp.sqrt(jnp.float32(fan_in))
        w = jax.random.uniform(kw, (fan_in, fan_out), jnp.float32, -bound, bound)
        b = jax.random.uniform(kb, (1, fan_out), jnp.float32, -bound, bound)
        return w.astype(w_dtype), b

    ks = jax.random.split(key, 6)
    w1, b1 = layer(ks[0], c_in, 256)                 # conv1 (kernel_size=1)
    w2, b2 = layer(ks[1], 256, 256)                  # conv2
    w3, b3 = layer(ks[2], 256, 256)                  # conv3
    wf1, bf1 = layer(ks[3], fc1_dims, fc1_dims)      # fc1
    wf2, bf2 = layer(ks[4], fc1_dims, fc2_dims)      # fc2
    wv_col, bv = layer(ks[5], fc2_dims, 1, w_dtype=jnp.float32)   # v head
    wv = wv_col.T                                    # (1, fc2_dims) f32 row
    return (w1, b1, w2, b2, w3, b3, wf1, bf1, wf2, bf2, wv, bv)


def reference_forward_bf16(state, params):
    """Pure-JAX reference replicating the kernel's numeric path exactly."""
    (w1, b1, w2, b2, w3, b3, wf1, bf1, wf2, bf2, wv, bv) = params

    def layer(h, w, b):
        acc = jnp.dot(h, w, preferred_element_type=jnp.float32) + b
        return jnp.maximum(acc, 0.0).astype(jnp.bfloat16)

    h = state.astype(jnp.bfloat16)
    h = layer(h, w1, b1)
    h = layer(h, w2, b2)
    h = layer(h, w3, b3)
    h = layer(h, wf1, bf1)
    h = layer(h, wf2, bf2)
    return jnp.sum(h.astype(jnp.float32) * wv, axis=-1, keepdims=True) + bv


def reference_forward_f32(state, params):
    """f32 reference (bf16-quantized params, f32 compute) — module semantics."""
    p = [a.astype(jnp.float32) for a in params]
    (w1, b1, w2, b2, w3, b3, wf1, bf1, wf2, bf2, wv, bv) = p
    h = jnp.maximum(state @ w1 + b1, 0.0)
    h = jnp.maximum(h @ w2 + b2, 0.0)
    h = jnp.maximum(h @ w3 + b3, 0.0)
    h = jnp.maximum(h @ wf1 + bf1, 0.0)
    h = jnp.maximum(h @ wf2 + bf2, 0.0)
    return h @ wv.T + bv


if __name__ == "__main__":
    key = jax.random.PRNGKey(0)
    k_params, k_state = jax.random.split(key)

    B, C_IN = 8, 4                       # input_dims = (4,), small batch
    params = init_params(k_params, C_IN)
    state = jax.random.normal(k_state, (B, C_IN), jnp.float32)

    v = value_forward(state, params)
    v = jax.block_until_ready(v)
    assert v.shape == (B, 1)

    # exact-path check (same bf16 matmul / f32 accumulate / f32 head math)
    v_ref = reference_forward_bf16(state, params)
    assert jnp.allclose(v, v_ref, atol=5e-3, rtol=5e-3), \
        f"max |diff| = {float(jnp.max(jnp.abs(v - v_ref)))}"

    # loose check against f32 compute (original module semantics)
    v_f32 = reference_forward_f32(state, params)
    assert jnp.allclose(v, v_f32, atol=5e-2, rtol=5e-2)

    print("KERNEL_OK")
</pallas_src>

<mosaic_0001>
module attributes {stable_mosaic.version = 11 : i64} {
  func.func @value_kernel(%arg0: i32, %arg1: memref<8x4xf32, #tpu.memory_space<vmem>>, %arg2: memref<4x256xbf16, #tpu.memory_space<vmem>>, %arg3: memref<1x256xf32, #tpu.memory_space<vmem>>, %arg4: memref<256x256xbf16, #tpu.memory_space<vmem>>, %arg5: memref<1x256xf32, #tpu.memory_space<vmem>>, %arg6: memref<256x256xbf16, #tpu.memory_space<vmem>>, %arg7: memref<1x256xf32, #tpu.memory_space<vmem>>, %arg8: memref<256x256xbf16, #tpu.memory_space<vmem>>, %arg9: memref<1x256xf32, #tpu.memory_space<vmem>>, %arg10: memref<256x256xbf16, #tpu.memory_space<vmem>>, %arg11: memref<1x256xf32, #tpu.memory_space<vmem>>, %arg12: memref<1x256xf32, #tpu.memory_space<vmem>>, %arg13: memref<1x1xf32, #tpu.memory_space<vmem>>, %arg14: memref<8x1xf32, #tpu.memory_space<vmem>>) attributes {dimension_semantics = [#tpu.dimension_semantics<parallel>], iteration_bounds = array<i64: 1>, scalar_prefetch = 0 : i64, scratch_operands = 0 : i64, tpu.core_type = #tpu.core_type<tc>, window_params = [{transform_indices = @transform_0, window_bounds = array<i64: 8, 4>}, {pipeline_mode = #tpu.pipeline_mode<synchronous>, transform_indices = @transform_1, window_bounds = array<i64: 4, 256>}, {pipeline_mode = #tpu.pipeline_mode<synchronous>, transform_indices = @transform_2, window_bounds = array<i64: 1, 256>}, {pipeline_mode = #tpu.pipeline_mode<synchronous>, transform_indices = @transform_3, window_bounds = array<i64: 256, 256>}, {pipeline_mode = #tpu.pipeline_mode<synchronous>, transform_indices = @transform_4, window_bounds = array<i64: 1, 256>}, {pipeline_mode = #tpu.pipeline_mode<synchronous>, transform_indices = @transform_5, window_bounds = array<i64: 256, 256>}, {pipeline_mode = #tpu.pipeline_mode<synchronous>, transform_indices = @transform_6, window_bounds = array<i64: 1, 256>}, {pipeline_mode = #tpu.pipeline_mode<synchronous>, transform_indices = @transform_7, window_bounds = array<i64: 256, 256>}, {pipeline_mode = #tpu.pipeline_mode<synchronous>, transform_indices = @transform_8, window_bounds = array<i64: 1, 256>}, {pipeline_mode = #tpu.pipeline_mode<synchronous>, transform_indices = @transform_9, window_bounds = array<i64: 256, 256>}, {pipeline_mode = #tpu.pipeline_mode<synchronous>, transform_indices = @transform_10, window_bounds = array<i64: 1, 256>}, {pipeline_mode = #tpu.pipeline_mode<synchronous>, transform_indices = @transform_11, window_bounds = array<i64: 1, 256>}, {pipeline_mode = #tpu.pipeline_mode<synchronous>, transform_indices = @transform_12, window_bounds = array<i64: 1, 1>}, {transform_indices = @transform_13, window_bounds = array<i64: 8, 1>}]} {
    %c0 = arith.constant 0 : index
    %c0_0 = arith.constant 0 : index
    %0 = vector.load %arg1[%c0, %c0_0] : memref<8x4xf32, #tpu.memory_space<vmem>>, vector<8x4xf32>
    %1 = arith.truncf %0 : vector<8x4xf32> to vector<8x4xbf16>
    %c0_1 = arith.constant 0 : index
    %c0_2 = arith.constant 0 : index
    %2 = vector.load %arg2[%c0_1, %c0_2] : memref<4x256xbf16, #tpu.memory_space<vmem>>, vector<4x256xbf16>
    %cst = arith.constant dense<0.000000e+00> : vector<8x256xf32>
    %3 = tpu.matmul %1, %2, %cst {dimension_numbers = #tpu.dot_dimension_numbers<[1], [0], [0], [1], [0, 0, 1, 1], [], []>} : vector<8x4xbf16>, vector<4x256xbf16>, vector<8x256xf32> -> vector<8x256xf32>
    %c0_3 = arith.constant 0 : index
    %c0_4 = arith.constant 0 : index
    %4 = vector.load %arg3[%c0_3, %c0_4] : memref<1x256xf32, #tpu.memory_space<vmem>>, vector<1x256xf32>
    %5 = vector.broadcast %4 : vector<1x256xf32> to vector<8x256xf32>
    %6 = arith.addf %3, %5 : vector<8x256xf32>
    %cst_5 = arith.constant 0.000000e+00 : f32
    %7 = vector.broadcast %cst_5 : f32 to vector<8x256xf32>
    %8 = arith.maximumf %6, %7 : vector<8x256xf32>
    %9 = arith.truncf %8 : vector<8x256xf32> to vector<8x256xbf16>
    %c0_6 = arith.constant 0 : index
    %c0_7 = arith.constant 0 : index
    %10 = vector.load %arg4[%c0_6, %c0_7] : memref<256x256xbf16, #tpu.memory_space<vmem>>, vector<256x256xbf16>
    %cst_8 = arith.constant dense<0.000000e+00> : vector<8x256xf32>
    %11 = tpu.matmul %9, %10, %cst_8 {dimension_numbers = #tpu.dot_dimension_numbers<[1], [0], [0], [1], [0, 0, 1, 1], [], []>} : vector<8x256xbf16>, vector<256x256xbf16>, vector<8x256xf32> -> vector<8x256xf32>
    %c0_9 = arith.constant 0 : index
    %c0_10 = arith.constant 0 : index
    %12 = vector.load %arg5[%c0_9, %c0_10] : memref<1x256xf32, #tpu.memory_space<vmem>>, vector<1x256xf32>
    %13 = vector.broadcast %12 : vector<1x256xf32> to vector<8x256xf32>
    %14 = arith.addf %11, %13 : vector<8x256xf32>
    %cst_11 = arith.constant 0.000000e+00 : f32
    %15 = vector.broadcast %cst_11 : f32 to vector<8x256xf32>
    %16 = arith.maximumf %14, %15 : vector<8x256xf32>
    %17 = arith.truncf %16 : vector<8x256xf32> to vector<8x256xbf16>
    %c0_12 = arith.constant 0 : index
    %c0_13 = arith.constant 0 : index
    %18 = vector.load %arg6[%c0_12, %c0_13] : memref<256x256xbf16, #tpu.memory_space<vmem>>, vector<256x256xbf16>
    %cst_14 = arith.constant dense<0.000000e+00> : vector<8x256xf32>
    %19 = tpu.matmul %17, %18, %cst_14 {dimension_numbers = #tpu.dot_dimension_numbers<[1], [0], [0], [1], [0, 0, 1, 1], [], []>} : vector<8x256xbf16>, vector<256x256xbf16>, vector<8x256xf32> -> vector<8x256xf32>
    %c0_15 = arith.constant 0 : index
    %c0_16 = arith.constant 0 : index
    %20 = vector.load %arg7[%c0_15, %c0_16] : memref<1x256xf32, #tpu.memory_space<vmem>>, vector<1x256xf32>
    %21 = vector.broadcast %20 : vector<1x256xf32> to vector<8x256xf32>
    %22 = arith.addf %19, %21 : vector<8x256xf32>
    %cst_17 = arith.constant 0.000000e+00 : f32
    %23 = vector.broadcast %cst_17 : f32 to vector<8x256xf32>
    %24 = arith.maximumf %22, %23 : vector<8x256xf32>
    %25 = arith.truncf %24 : vector<8x256xf32> to vector<8x256xbf16>
    %c0_18 = arith.constant 0 : index
    %c0_19 = arith.constant 0 : index
    %26 = vector.load %arg8[%c0_18, %c0_19] : memref<256x256xbf16, #tpu.memory_space<vmem>>, vector<256x256xbf16>
    %cst_20 = arith.constant dense<0.000000e+00> : vector<8x256xf32>
    %27 = tpu.matmul %25, %26, %cst_20 {dimension_numbers = #tpu.dot_dimension_numbers<[1], [0], [0], [1], [0, 0, 1, 1], [], []>} : vector<8x256xbf16>, vector<256x256xbf16>, vector<8x256xf32> -> vector<8x256xf32>
    %c0_21 = arith.constant 0 : index
    %c0_22 = arith.constant 0 : index
    %28 = vector.load %arg9[%c0_21, %c0_22] : memref<1x256xf32, #tpu.memory_space<vmem>>, vector<1x256xf32>
    %29 = vector.broadcast %28 : vector<1x256xf32> to vector<8x256xf32>
    %30 = arith.addf %27, %29 : vector<8x256xf32>
    %cst_23 = arith.constant 0.000000e+00 : f32
    %31 = vector.broadcast %cst_23 : f32 to vector<8x256xf32>
    %32 = arith.maximumf %30, %31 : vector<8x256xf32>
    %33 = arith.truncf %32 : vector<8x256xf32> to vector<8x256xbf16>
    %c0_24 = arith.constant 0 : index
    %c0_25 = arith.constant 0 : index
    %34 = vector.load %arg10[%c0_24, %c0_25] : memref<256x256xbf16, #tpu.memory_space<vmem>>, vector<256x256xbf16>
    %cst_26 = arith.constant dense<0.000000e+00> : vector<8x256xf32>
    %35 = tpu.matmul %33, %34, %cst_26 {dimension_numbers = #tpu.dot_dimension_numbers<[1], [0], [0], [1], [0, 0, 1, 1], [], []>} : vector<8x256xbf16>, vector<256x256xbf16>, vector<8x256xf32> -> vector<8x256xf32>
    %c0_27 = arith.constant 0 : index
    %c0_28 = arith.constant 0 : index
    %36 = vector.load %arg11[%c0_27, %c0_28] : memref<1x256xf32, #tpu.memory_space<vmem>>, vector<1x256xf32>
    %37 = vector.broadcast %36 : vector<1x256xf32> to vector<8x256xf32>
    %38 = arith.addf %35, %37 : vector<8x256xf32>
    %cst_29 = arith.constant 0.000000e+00 : f32
    %39 = vector.broadcast %cst_29 : f32 to vector<8x256xf32>
    %40 = arith.maximumf %38, %39 : vector<8x256xf32>
    %41 = arith.truncf %40 : vector<8x256xf32> to vector<8x256xbf16>
    %42 = arith.extf %41 : vector<8x256xbf16> to vector<8x256xf32>
    %c0_30 = arith.constant 0 : index
    %c0_31 = arith.constant 0 : index
    %43 = vector.load %arg12[%c0_30, %c0_31] : memref<1x256xf32, #tpu.memory_space<vmem>>, vector<1x256xf32>
    %44 = vector.broadcast %43 : vector<1x256xf32> to vector<8x256xf32>
    %45 = arith.mulf %42, %44 : vector<8x256xf32>
    %cst_32 = arith.constant dense<0.000000e+00> : vector<8xf32>
    %46 = vector.multi_reduction <add>, %45, %cst_32 [1] : vector<8x256xf32> to vector<8xf32>
    %47 = vector.shape_cast %46 : vector<8xf32> to vector<8x1xf32>
    %c0_33 = arith.constant 0 : index
    %c0_34 = arith.constant 0 : index
    %48 = vector.load %arg13[%c0_33, %c0_34] : memref<1x1xf32, #tpu.memory_space<vmem>>, vector<1x1xf32>
    %49 = vector.broadcast %48 : vector<1x1xf32> to vector<8x1xf32>
    %50 = arith.addf %47, %49 : vector<8x1xf32>
    %c0_35 = arith.constant 0 : index
    %c0_36 = arith.constant 0 : index
    %51 = vector.load %arg14[%c0_35, %c0_36] : memref<8x1xf32, #tpu.memory_space<vmem>>, vector<8x1xf32>
    tpu.vector_store %arg14[%c0_35, %c0_36], %50 {strides = array<i32>} : memref<8x1xf32, #tpu.memory_space<vmem>>, vector<8x1xf32>,
    return
  }
  func.func @transform_0(%arg0: i32) -> (i32, i32) {
    %c0_i32 = arith.constant 0 : i32
    %c0_i32_0 = arith.constant 0 : i32
    return %arg0, %c0_i32 : i32, i32
  }
  func.func @transform_1(%arg0: i32) -> (i32, i32) {
    %c0_i32 = arith.constant 0 : i32
    %c0_i32_0 = arith.constant 0 : i32
    %c0_i32_1 = arith.constant 0 : i32
    return %c0_i32, %c0_i32_0 : i32, i32
  }
  func.func @transform_2(%arg0: i32) -> (i32, i32) {
    %c0_i32 = arith.constant 0 : i32
    %c0_i32_0 = arith.constant 0 : i32
    %c0_i32_1 = arith.constant 0 : i32
    return %c0_i32, %c0_i32_0 : i32, i32
  }
  func.func @transform_3(%arg0: i32) -> (i32, i32) {
    %c0_i32 = arith.constant 0 : i32
    %c0_i32_0 = arith.constant 0 : i32
    %c0_i32_1 = arith.constant 0 : i32
    return %c0_i32, %c0_i32_0 : i32, i32
  }
  func.func @transform_4(%arg0: i32) -> (i32, i32) {
    %c0_i32 = arith.constant 0 : i32
    %c0_i32_0 = arith.constant 0 : i32
    %c0_i32_1 = arith.constant 0 : i32
    return %c0_i32, %c0_i32_0 : i32, i32
  }
  func.func @transform_5(%arg0: i32) -> (i32, i32) {
    %c0_i32 = arith.constant 0 : i32
    %c0_i32_0 = arith.constant 0 : i32
    %c0_i32_1 = arith.constant 0 : i32
    return %c0_i32, %c0_i32_0 : i32, i32
  }
  func.func @transform_6(%arg0: i32) -> (i32, i32) {
    %c0_i32 = arith.constant 0 : i32
    %c0_i32_0 = arith.constant 0 : i32
    %c0_i32_1 = arith.constant 0 : i32
    return %c0_i32, %c0_i32_0 : i32, i32
  }
  func.func @transform_7(%arg0: i32) -> (i32, i32) {
    %c0_i32 = arith.constant 0 : i32
    %c0_i32_0 = arith.constant 0 : i32
    %c0_i32_1 = arith.constant 0 : i32
    return %c0_i32, %c0_i32_0 : i32, i32
  }
  func.func @transform_8(%arg0: i32) -> (i32, i32) {
    %c0_i32 = arith.constant 0 : i32
    %c0_i32_0 = arith.constant 0 : i32
    %c0_i32_1 = arith.constant 0 : i32
    return %c0_i32, %c0_i32_0 : i32, i32
  }
  func.func @transform_9(%arg0: i32) -> (i32, i32) {
    %c0_i32 = arith.constant 0 : i32
    %c0_i32_0 = arith.constant 0 : i32
    %c0_i32_1 = arith.constant 0 : i32
    return %c0_i32, %c0_i32_0 : i32, i32
  }
  func.func @transform_10(%arg0: i32) -> (i32, i32) {
    %c0_i32 = arith.constant 0 : i32
    %c0_i32_0 = arith.constant 0 : i32
    %c0_i32_1 = arith.constant 0 : i32
    return %c0_i32, %c0_i32_0 : i32, i32
  }
  func.func @transform_11(%arg0: i32) -> (i32, i32) {
    %c0_i32 = arith.constant 0 : i32
    %c0_i32_0 = arith.constant 0 : i32
    %c0_i32_1 = arith.constant 0 : i32
    return %c0_i32, %c0_i32_0 : i32, i32
  }
  func.func @transform_12(%arg0: i32) -> (i32, i32) {
    %c0_i32 = arith.constant 0 : i32
    %c0_i32_0 = arith.constant 0 : i32
    %c0_i32_1 = arith.constant 0 : i32
    return %c0_i32, %c0_i32_0 : i32, i32
  }
  func.func @transform_13(%arg0: i32) -> (i32, i32) {
    %c0_i32 = arith.constant 0 : i32
    %c0_i32_0 = arith.constant 0 : i32
    return %arg0, %c0_i32 : i32, i32
  }
}

</mosaic_0001>

<llo_original>
// kernel: tpu_custom_call.1
$region0: #{tpu_custom_call.1}
  #allocation0 [shape = 'u32[]', space=smem, size = 0x4, offset = 0x4, fixed_abs, tag = 'smem constant byte address 0x4 - core index']
  #allocation1 [shape = 'u32[144,128]{1,0:T(1,128)}', space=vmem, size = 0x12000, scoped, tag = 'internal scratch']
  #allocation2 [shape = 'f32[1,1]{1,0:T(1,128)S(1)}', space=vmem, size = 0x200, scoped, tag = 'scoped memory for tpu_custom_call.1']
  %s0 = inlined_call_operand.vmem [shape: f32[8,4], index: 0, kind: input, shape index: {}]
  %s1 = inlined_call_operand.vmem [shape: bf16[4,256], index: 1, kind: input, shape index: {}]
  %s2 = inlined_call_operand.vmem [shape: f32[1,256], index: 2, kind: input, shape index: {}]
  %s3 = inlined_call_operand.hbm [shape: bf16[256,256], index: 3, kind: input, shape index: {}]
  %s4 = inlined_call_operand.vmem [shape: f32[1,256], index: 4, kind: input, shape index: {}]
  %s5 = inlined_call_operand.hbm [shape: bf16[256,256], index: 5, kind: input, shape index: {}]
  %s6 = inlined_call_operand.vmem [shape: f32[1,256], index: 6, kind: input, shape index: {}]
  %s7 = inlined_call_operand.hbm [shape: bf16[256,256], index: 7, kind: input, shape index: {}]
  %s8 = inlined_call_operand.vmem [shape: f32[1,256], index: 8, kind: input, shape index: {}]
  %s9 = inlined_call_operand.hbm [shape: bf16[256,256], index: 9, kind: input, shape index: {}]
  %s10 = inlined_call_operand.vmem [shape: f32[1,256], index: 10, kind: input, shape index: {}]
  %s11 = inlined_call_operand.vmem [shape: f32[1,256], index: 11, kind: input, shape index: {}]
  %s12 = inlined_call_operand.<no memory space> [shape: f32[1,1], index: 12, kind: input, shape index: {}]
  %s13 = inlined_call_operand.vmem [shape: f32[8,1], index: 13, kind: output, shape index: {}]
  %s14 = sld [smem:[#allocation0]]
  $region78: #{tpu_custom_call.1} parent=0
    _
  %s16 = ssub.s32 1, %s14
  %s17 = scalar_select 0, %s16, %s14
  %v18 = vstv %s12
  %19 = vst [vmem:[#allocation2] sm:$0x1] %v18
  $region1: #{tpu_custom_call.1} parent=0
    #allocation3 [shape = 'u8[131072]{0}', space=vmem, size = 0x20000, scoped, tag = 'input window, operand 3, single buffered']
    #allocation4 [shape = 's32[1]{0}', space=sflag, size = 0x4, scoped, tag = 'scoped memory for tpu_custom_call.1']
    #allocation5 [shape = 'u8[131072]{0}', space=vmem, size = 0x20000, scoped, tag = 'input window, operand 5, single buffered']
    #allocation6 [shape = 's32[1]{0}', space=sflag, size = 0x4, scoped, tag = 'scoped memory for tpu_custom_call.1']
    #allocation7 [shape = 'u8[131072]{0}', space=vmem, size = 0x20000, scoped, tag = 'input window, operand 7, single buffered']
    #allocation8 [shape = 'u8[131072]{0}', space=vmem, size = 0x20000, scoped, tag = 'input window, operand 9, single buffered']
    #allocation9 [shape = 's32[1]{0}', space=sflag, size = 0x4, scoped, tag = 'scoped memory for tpu_custom_call.1']
    %20 = vsyncpa [#allocation4], 0
    %21 = vsyncpa [#allocation6], 0
    %22 = vsyncpa [#allocation9], 0
    // Predicated region
    $region2: #{tpu_custom_call.1} parent=1 // pred_check
      _
    $region3: #{tpu_custom_call.1} parent=1 // pred_check_branch
      %24 = sbr.rel (0) target = $region5
    $region4: #{tpu_custom_call.1} parent=1 // pred_region
      _
    $region5: #{tpu_custom_call.1} parent=1 // pred_fallthru
      _
    // Predicated region
    $region6: #{tpu_custom_call.1} parent=1 // pred_check
      _
    $region7: #{tpu_custom_call.1} parent=1 // pred_check_branch
      %26 = sbr.rel (0) target = $region9
    $region8: #{tpu_custom_call.1} parent=1 // pred_region
      _
    $region9: #{tpu_custom_call.1} parent=1 // pred_fallthru
      _
    // Predicated region
    $region10: #{tpu_custom_call.1} parent=1 // pred_check
      _
    $region11: #{tpu_custom_call.1} parent=1 // pred_check_branch
      %28 = sbr.rel (0) target = $region13
    $region12: #{tpu_custom_call.1} parent=1 // pred_region
      _
    $region13: #{tpu_custom_call.1} parent=1 // pred_fallthru
      _
    // Predicated region
    $region14: #{tpu_custom_call.1} parent=1 // pred_check
      _
    $region15: #{tpu_custom_call.1} parent=1 // pred_check_branch
      %30 = sbr.rel (0) target = $region17
    $region16: #{tpu_custom_call.1} parent=1 // pred_region
      %s32 = ssub.s32 4096, 4096
      %33 = vsyncadd [#allocation4], %s32
      %s34 = sshll.u32 [#allocation3], 4
      %s35 = int_to_ptr.vmem [resolvable:$true] %s34
      %40 = dma.hbm_to_vmem [thread:$0]  %s3, 4096, %s35, [#allocation4], 128, 128, 8
    $region17: #{tpu_custom_call.1} parent=1 // pred_fallthru
      _
    // Predicated region
    $region18: #{tpu_custom_call.1} parent=1 // pred_check
      _
    $region19: #{tpu_custom_call.1} parent=1 // pred_check_branch
      %42 = sbr.rel (0) target = $region21
    $region20: #{tpu_custom_call.1} parent=1 // pred_region
      _
    $region21: #{tpu_custom_call.1} parent=1 // pred_fallthru
      _
    // Predicated region
    $region22: #{tpu_custom_call.1} parent=1 // pred_check
      _
    $region23: #{tpu_custom_call.1} parent=1 // pred_check_branch
      %44 = sbr.rel (0) target = $region25
    $region24: #{tpu_custom_call.1} parent=1 // pred_region
      %s46 = ssub.s32 4096, 4096
      %47 = vsyncadd [#allocation6], %s46
      %s48 = sshll.u32 [#allocation5], 4
      %s49 = int_to_ptr.vmem [resolvable:$true] %s48
      %54 = dma.hbm_to_vmem [thread:$0]  %s5, 4096, %s49, [#allocation6], 128, 128, 8
    $region25: #{tpu_custom_call.1} parent=1 // pred_fallthru
      _
    // Predicated region
    $region26: #{tpu_custom_call.1} parent=1 // pred_check
      _
    $region27: #{tpu_custom_call.1} parent=1 // pred_check_branch
      %56 = sbr.rel (0) target = $region29
    $region28: #{tpu_custom_call.1} parent=1 // pred_region
      _
    $region29: #{tpu_custom_call.1} parent=1 // pred_fallthru
      _
    // Predicated region
    $region30: #{tpu_custom_call.1} parent=1 // pred_check
      _
    $region31: #{tpu_custom_call.1} parent=1 // pred_check_branch
      %58 = sbr.rel (0) target = $region33
    $region32: #{tpu_custom_call.1} parent=1 // pred_region
      %s60 = ssub.s32 4096, 4096
      %61 = vsyncadd [#allocation6], %s60
      %s62 = sshll.u32 [#allocation7], 4
      %s63 = int_to_ptr.vmem [resolvable:$true] %s62
      %68 = dma.hbm_to_vmem [thread:$0]  %s7, 4096, %s63, [#allocation6], 128, 128, 8
    $region33: #{tpu_custom_call.1} parent=1 // pred_fallthru
      _
    // Predicated region
    $region34: #{tpu_custom_call.1} parent=1 // pred_check
      _
    $region35: #{tpu_custom_call.1} parent=1 // pred_check_branch
      %70 = sbr.rel (0) target = $region37
    $region36: #{tpu_custom_call.1} parent=1 // pred_region
      _
    $region37: #{tpu_custom_call.1} parent=1 // pred_fallthru
      _
    // Predicated region
    $region38: #{tpu_custom_call.1} parent=1 // pred_check
      _
    $region39: #{tpu_custom_call.1} parent=1 // pred_check_branch
      %72 = sbr.rel (0) target = $region41
    $region40: #{tpu_custom_call.1} parent=1 // pred_region
      %s74 = ssub.s32 4096, 4096
      %75 = vsyncadd [#allocation9], %s74
      %s76 = sshll.u32 [#allocation8], 4
      %s77 = int_to_ptr.vmem [resolvable:$true] %s76
      %82 = dma.hbm_to_vmem [thread:$0]  %s9, 4096, %s77, [#allocation9], 128, 128, 8
    $region41: #{tpu_custom_call.1} parent=1 // pred_fallthru
      _
    // Predicated region
    $region42: #{tpu_custom_call.1} parent=1 // pred_check
      _
    $region43: #{tpu_custom_call.1} parent=1 // pred_check_branch
      %84 = sbr.rel (0) target = $region45
    $region44: #{tpu_custom_call.1} parent=1 // pred_region
      _
    $region45: #{tpu_custom_call.1} parent=1 // pred_fallthru
      _
    // Predicated region
    $region46: #{tpu_custom_call.1} parent=1 // pred_check
      _
    $region47: #{tpu_custom_call.1} parent=1 // pred_check_branch
      %86 = sbr.rel (0) target = $region49
    $region48: #{tpu_custom_call.1} parent=1 // pred_region
      _
    $region49: #{tpu_custom_call.1} parent=1 // pred_fallthru
      _
    // Predicated region
    $region50: #{tpu_custom_call.1} parent=1 // pred_check
      _
    $region51: #{tpu_custom_call.1} parent=1 // pred_check_branch
      %88 = sbr.rel (0) target = $region53
    $region52: #{tpu_custom_call.1} parent=1 // pred_region
      _
    $region53: #{tpu_custom_call.1} parent=1 // pred_fallthru
      _
    // Predicated region
    $region54: #{tpu_custom_call.1} parent=1 // pred_check
      _
    $region55: #{tpu_custom_call.1} parent=1 // pred_check_branch
      %90 = sbr.rel (0) target = $region57
    $region56: #{tpu_custom_call.1} parent=1 // pred_region
      %91 = dma.done [#allocation4], 4096
    $region57: #{tpu_custom_call.1} parent=1 // pred_fallthru
      _
    // Predicated region
    $region58: #{tpu_custom_call.1} parent=1 // pred_check
      _
    $region59: #{tpu_custom_call.1} parent=1 // pred_check_branch
      %93 = sbr.rel (0) target = $region61
    $region60: #{tpu_custom_call.1} parent=1 // pred_region
      %94 = dma.done [#allocation6], 4096
    $region61: #{tpu_custom_call.1} parent=1 // pred_fallthru
      _
    // Predicated region
    $region62: #{tpu_custom_call.1} parent=1 // pred_check
      _
    $region63: #{tpu_custom_call.1} parent=1 // pred_check_branch
      %96 = sbr.rel (0) target = $region65
    $region64: #{tpu_custom_call.1} parent=1 // pred_region
      %97 = dma.done [#allocation6], 4096
    $region65: #{tpu_custom_call.1} parent=1 // pred_fallthru
      _
    // Predicated region
    $region66: #{tpu_custom_call.1} parent=1 // pred_check
      _
    $region67: #{tpu_custom_call.1} parent=1 // pred_check_branch
      %99 = sbr.rel (0) target = $region69
    $region68: #{tpu_custom_call.1} parent=1 // pred_region
      %100 = dma.done [#allocation9], 4096
    $region69: #{tpu_custom_call.1} parent=1 // pred_fallthru
      _
    %v102 = vld [vmem:[%s0] sm:$0xff]
    %v103 = vpack.c.bf16 %v102, %v102
    %v104 = vld [vmem:[%s1] sm:$0xf]
    %v105 = vld [vmem:[%s2] sm:$0x3]
    %v107 = vlaneseq
    %v108 = vshrl.u32 %v107, 7
    %v109 = vsub.s32 0, %v108
    %v110 = vrot.slane %v105, %v109
    %v111 = vlaneseq
    %v112 = vshrl.u32 %v111, 7
    %v113 = vsub.s32 1, %v112
    %v114 = vrot.slane %v105, %v113
    %v119 = vunpack.c.l.s4 1983009808
    %v120 = vunpack.c.0.s8 %v119
    %v121 = vlaneseq
    %v122 = vshrl.u32 %v121, 7
    %v123 = vsub.s32 %v120, %v122
    %v124 = vrot.slane %v104, %v123
    %v125 = vcombine.high %v124, %v124
    %vm126 = vcmask 31744
    %v128 = vsel %vm126, %v103, 0
    %vm130 = vcmask 1041408
    %v132 = vsel %vm130, %v124, 0
    %v135 = vsel %vm130, %v125, 0
    %137 = vmatprep.subr.bf16.mxu0 %v135
    %138 = vmatpush1.bf16.msra.mxu0 %v132
    %139 = vmatprep.subr.bf16.mxu0 0
    %140 = vmatpush1.bf16.msra.mxu0 0
    %141 = vmatprep.subr.bf16.mxu0 0
    %142 = vmatpush1.bf16.msra.mxu0 0
    %143 = vmatprep.subr.bf16.mxu0 0
    %144 = vmatpush1.bf16.msra.mxu0 0
    %145 = vmatprep.subr.bf16.mxu0 0
    %146 = vmatpush1.bf16.msra.mxu0 0
    %147 = vmatprep.subr.bf16.mxu0 0
    %148 = vmatpush1.bf16.msra.mxu0 0
    %149 = vmatprep.subr.bf16.mxu0 0
    %150 = vmatpush1.bf16.msra.mxu0 0
    %151 = vmatprep.subr.bf16.mxu0 0
    %152 = vmatpush1.bf16.msra.mxu0 0
    %153 = vmatprep.subr.bf16.mxu0 0
    %154 = vmatpush1.bf16.msra.mxu0 0
    %155 = vmatprep.subr.bf16.mxu0 0
    %156 = vmatpush1.bf16.msra.mxu0 0
    %157 = vmatprep.subr.bf16.mxu0 0
    %158 = vmatpush1.bf16.msra.mxu0 0
    %159 = vmatprep.subr.bf16.mxu0 0
    %160 = vmatpush1.bf16.msra.mxu0 0
    %161 = vmatprep.subr.bf16.mxu0 0
    %162 = vmatpush1.bf16.msra.mxu0 0
    %163 = vmatprep.subr.bf16.mxu0 0
    %164 = vmatpush1.bf16.msra.mxu0 0
    %165 = vmatprep.subr.bf16.mxu0 0
    %166 = vmatpush1.bf16.msra.mxu0 0
    %167 = vmatprep.subr.bf16.mxu0 0
    %168 = vmatpush1.bf16.msra.mxu0 0
    %169 = vmatprep.mubr.bf16.mxu0 0
    %170 = vmatmul.mubr.bf16.gmra.mrb[0].mxu0 %v128
    %v171 = vpop.f32.mrb[0].mxu0
    %v172 = vadd.f32 %v110, %v171
    %v173 = vpop.f32.mrb[0].mxu0
    %v174 = vadd.f32 %v114, %v173
    %v175 = vpop.f32.mrb[0].mxu0
    %v176 = vpop.f32.mrb[0].mxu0
    %177 = vdwg.mxu0
    %v178 = vmax.f32 %v172, 0.0
    %v179 = vmax.f32 %v174, 0.0
    %v180 = vpack.c.bf16 %v178, %v178
    %v181 = vpack.c.bf16 %v179, %v179
    %v182 = vld [vmem:[#allocation3] sm:$0xff]
    %v183 = vld [vmem:[#allocation3 + $0x8] sm:$0xff]
    %v184 = vld [vmem:[#allocation3 + $0x10] sm:$0xff]
    %v185 = vld [vmem:[#allocation3 + $0x18] sm:$0xff]
    %v186 = vld [vmem:[#allocation3 + $0x20] sm:$0xff]
    %v187 = vld [vmem:[#allocation3 + $0x28] sm:$0xff]
    %v188 = vld [vmem:[#allocation3 + $0x30] sm:$0xff]
    %v189 = vld [vmem:[#allocation3 + $0x38] sm:$0xff]
    %v190 = vld [vmem:[#allocation3 + $0x40] sm:$0xff]
    %v191 = vld [vmem:[#allocation3 + $0x48] sm:$0xff]
    %v192 = vld [vmem:[#allocation3 + $0x50] sm:$0xff]
    %v193 = vld [vmem:[#allocation3 + $0x58] sm:$0xff]
    %v194 = vld [vmem:[#allocation3 + $0x60] sm:$0xff]
    %v195 = vld [vmem:[#allocation3 + $0x68] sm:$0xff]
    %v196 = vld [vmem:[#allocation3 + $0x70] sm:$0xff]
    %v197 = vld [vmem:[#allocation3 + $0x78] sm:$0xff]
    %v198 = vld [vmem:[#allocation3 + $0x80] sm:$0xff]
    %v199 = vld [vmem:[#allocation3 + $0x88] sm:$0xff]
    %v200 = vld [vmem:[#allocation3 + $0x90] sm:$0xff]
    %v201 = vld [vmem:[#allocation3 + $0x98] sm:$0xff]
    %v202 = vld [vmem:[#allocation3 + $0xa0] sm:$0xff]
    %v203 = vld [vmem:[#allocation3 + $0xa8] sm:$0xff]
    %v204 = vld [vmem:[#allocation3 + $0xb0] sm:$0xff]
    %v205 = vld [vmem:[#allocation3 + $0xb8] sm:$0xff]
    %v206 = vld [vmem:[#allocation3 + $0xc0] sm:$0xff]
    %v207 = vld [vmem:[#allocation3 + $0xc8] sm:$0xff]
    %v208 = vld [vmem:[#allocation3 + $0xd0] sm:$0xff]
    %v209 = vld [vmem:[#allocation3 + $0xd8] sm:$0xff]
    %v210 = vld [vmem:[#allocation3 + $0xe0] sm:$0xff]
    %v211 = vld [vmem:[#allocation3 + $0xe8] sm:$0xff]
    %v212 = vld [vmem:[#allocation3 + $0xf0] sm:$0xff]
    %v213 = vld [vmem:[#allocation3 + $0xf8] sm:$0xff]
    %v214 = vld [vmem:[%s4] sm:$0x3]
    %v216 = vlaneseq
    %v217 = vshrl.u32 %v216, 7
    %v218 = vsub.s32 0, %v217
    %v219 = vrot.slane %v214, %v218
    %v220 = vlaneseq
    %v221 = vshrl.u32 %v220, 7
    %v222 = vsub.s32 1, %v221
    %v223 = vrot.slane %v214, %v222
    %v258 = vunpack.c.l.b16 %v182
    %v259 = vunpack.c.h.b16 %v182
    %v260 = vunpack.c.l.b16 %v183
    %v261 = vunpack.c.h.b16 %v183
    %v262 = vunpack.c.l.b16 %v184
    %v263 = vunpack.c.h.b16 %v184
    %v264 = vunpack.c.l.b16 %v185
    %v265 = vunpack.c.h.b16 %v185
    %v266 = vunpack.c.l.b16 %v186
    %v267 = vunpack.c.h.b16 %v186
    %v268 = vunpack.c.l.b16 %v187
    %v269 = vunpack.c.h.b16 %v187
    %v270 = vunpack.c.l.b16 %v188
    %v271 = vunpack.c.h.b16 %v188
    %v272 = vunpack.c.l.b16 %v189
    %v273 = vunpack.c.h.b16 %v189
    %v274 = vunpack.c.l.b16 %v190
    %v275 = vunpack.c.h.b16 %v190
    %v276 = vunpack.c.l.b16 %v191
    %v277 = vunpack.c.h.b16 %v191
    %v278 = vunpack.c.l.b16 %v192
    %v279 = vunpack.c.h.b16 %v192
    %v280 = vunpack.c.l.b16 %v193
    %v281 = vunpack.c.h.b16 %v193
    %v282 = vunpack.c.l.b16 %v194
    %v283 = vunpack.c.h.b16 %v194
    %v284 = vunpack.c.l.b16 %v195
    %v285 = vunpack.c.h.b16 %v195
    %v286 = vunpack.c.l.b16 %v196
    %v287 = vunpack.c.h.b16 %v196
    %v288 = vunpack.c.l.b16 %v197
    %v289 = vunpack.c.h.b16 %v197
    %v290 = vunpack.c.l.b16 %v198
    %v291 = vunpack.c.h.b16 %v198
    %v292 = vunpack.c.l.b16 %v199
    %v293 = vunpack.c.h.b16 %v199
    %v294 = vunpack.c.l.b16 %v200
    %v295 = vunpack.c.h.b16 %v200
    %v296 = vunpack.c.l.b16 %v201
    %v297 = vunpack.c.h.b16 %v201
    %v298 = vunpack.c.l.b16 %v202
    %v299 = vunpack.c.h.b16 %v202
    %v300 = vunpack.c.l.b16 %v203
    %v301 = vunpack.c.h.b16 %v203
    %v302 = vunpack.c.l.b16 %v204
    %v303 = vunpack.c.h.b16 %v204
    %v304 = vunpack.c.l.b16 %v205
    %v305 = vunpack.c.h.b16 %v205
    %v306 = vunpack.c.l.b16 %v206
    %v307 = vunpack.c.h.b16 %v206
    %v308 = vunpack.c.l.b16 %v207
    %v309 = vunpack.c.h.b16 %v207
    %v310 = vunpack.c.l.b16 %v208
    %v311 = vunpack.c.h.b16 %v208
    %v312 = vunpack.c.l.b16 %v209
    %v313 = vunpack.c.h.b16 %v209
    %v314 = vunpack.c.l.b16 %v210
    %v315 = vunpack.c.h.b16 %v210
    %v316 = vunpack.c.l.b16 %v211
    %v317 = vunpack.c.h.b16 %v211
    %v318 = vunpack.c.l.b16 %v212
    %v319 = vunpack.c.h.b16 %v212
    %v320 = vunpack.c.l.b16 %v213
    %v321 = vunpack.c.h.b16 %v213
    %v322 = vpack.c.b16 %v260, %v258
    %v323 = vpack.c.b16 %v261, %v259
    %v324 = vpack.c.b16 %v264, %v262
    %v325 = vpack.c.b16 %v265, %v263
    %v326 = vpack.c.b16 %v268, %v266
    %v327 = vpack.c.b16 %v269, %v267
    %v328 = vpack.c.b16 %v272, %v270
    %v329 = vpack.c.b16 %v273, %v271
    %v330 = vpack.c.b16 %v276, %v274
    %v331 = vpack.c.b16 %v277, %v275
    %v332 = vpack.c.b16 %v280, %v278
    %v333 = vpack.c.b16 %v281, %v279
    %v334 = vpack.c.b16 %v284, %v282
    %v335 = vpack.c.b16 %v285, %v283
    %v336 = vpack.c.b16 %v288, %v286
    %v337 = vpack.c.b16 %v289, %v287
    %v338 = vpack.c.b16 %v292, %v290
    %v339 = vpack.c.b16 %v293, %v291
    %v340 = vpack.c.b16 %v296, %v294
    %v341 = vpack.c.b16 %v297, %v295
    %v342 = vpack.c.b16 %v300, %v298
    %v343 = vpack.c.b16 %v301, %v299
    %v344 = vpack.c.b16 %v304, %v302
    %v345 = vpack.c.b16 %v305, %v303
    %v346 = vpack.c.b16 %v308, %v306
    %v347 = vpack.c.b16 %v309, %v307
    %v348 = vpack.c.b16 %v312, %v310
    %v349 = vpack.c.b16 %v313, %v311
    %v350 = vpack.c.b16 %v316, %v314
    %v351 = vpack.c.b16 %v317, %v315
    %v352 = vpack.c.b16 %v320, %v318
    %v353 = vpack.c.b16 %v321, %v319
    %386 = vmatprep.subr.bf16.mxu0 %v323
    %387 = vmatpush1.bf16.msra.mxu0 %v322
    %388 = vmatprep.subr.bf16.mxu0 %v325
    %389 = vmatpush1.bf16.msra.mxu0 %v324
    %390 = vmatprep.subr.bf16.mxu0 %v327
    %391 = vmatpush1.bf16.msra.mxu0 %v326
    %392 = vmatprep.subr.bf16.mxu0 %v329
    %393 = vmatpush1.bf16.msra.mxu0 %v328
    %394 = vmatprep.subr.bf16.mxu0 %v331
    %395 = vmatpush1.bf16.msra.mxu0 %v330
    %396 = vmatprep.subr.bf16.mxu0 %v333
    %397 = vmatpush1.bf16.msra.mxu0 %v332
    %398 = vmatprep.subr.bf16.mxu0 %v335
    %399 = vmatpush1.bf16.msra.mxu0 %v334
    %400 = vmatprep.subr.bf16.mxu0 %v337
    %401 = vmatpush1.bf16.msra.mxu0 %v336
    %402 = vmatprep.subr.bf16.mxu0 %v339
    %403 = vmatpush1.bf16.msra.mxu0 %v338
    %404 = vmatprep.subr.bf16.mxu0 %v341
    %405 = vmatpush1.bf16.msra.mxu0 %v340
    %406 = vmatprep.subr.bf16.mxu0 %v343
    %407 = vmatpush1.bf16.msra.mxu0 %v342
    %408 = vmatprep.subr.bf16.mxu0 %v345
    %409 = vmatpush1.bf16.msra.mxu0 %v344
    %410 = vmatprep.subr.bf16.mxu0 %v347
    %411 = vmatpush1.bf16.msra.mxu0 %v346
    %412 = vmatprep.subr.bf16.mxu0 %v349
    %413 = vmatpush1.bf16.msra.mxu0 %v348
    %414 = vmatprep.subr.bf16.mxu0 %v351
    %415 = vmatpush1.bf16.msra.mxu0 %v350
    %416 = vmatprep.subr.bf16.mxu0 %v353
    %417 = vmatpush1.bf16.msra.mxu0 %v352
    %418 = vmatprep.mubr.bf16.mxu0 %v181
    %419 = vmatmul.mubr.bf16.gmra.mrb[0].mxu0 %v180
    %v420 = vpop.f32.mrb[0].mxu0
    %v421 = vadd.f32 %v219, %v420
    %v422 = vpop.f32.mrb[0].mxu0
    %v423 = vadd.f32 %v223, %v422
    %v424 = vpop.f32.mrb[0].mxu0
    %v425 = vpop.f32.mrb[0].mxu0
    %426 = vdwg.mxu0
    %v427 = vmax.f32 %v421, 0.0
    %v428 = vmax.f32 %v423, 0.0
    %v429 = vpack.c.bf16 %v427, %v427
    %v430 = vpack.c.bf16 %v428, %v428
    %v431 = vld [vmem:[#allocation5] sm:$0xff]
    %v432 = vld [vmem:[#allocation5 + $0x8] sm:$0xff]
    %v433 = vld [vmem:[#allocation5 + $0x10] sm:$0xff]
    %v434 = vld [vmem:[#allocation5 + $0x18] sm:$0xff]
    %v435 = vld [vmem:[#allocation5 + $0x20] sm:$0xff]
    %v436 = vld [vmem:[#allocation5 + $0x28] sm:$0xff]
    %v437 = vld [vmem:[#allocation5 + $0x30] sm:$0xff]
    %v438 = vld [vmem:[#allocation5 + $0x38] sm:$0xff]
    %v439 = vld [vmem:[#allocation5 + $0x40] sm:$0xff]
    %v440 = vld [vmem:[#allocation5 + $0x48] sm:$0xff]
    %v441 = vld [vmem:[#allocation5 + $0x50] sm:$0xff]
    %v442 = vld [vmem:[#allocation5 + $0x58] sm:$0xff]
    %v443 = vld [vmem:[#allocation5 + $0x60] sm:$0xff]
    %v444 = vld [vmem:[#allocation5 + $0x68] sm:$0xff]
    %v445 = vld [vmem:[#allocation5 + $0x70] sm:$0xff]
    %v446 = vld [vmem:[#allocation5 + $0x78] sm:$0xff]
    %v447 = vld [vmem:[#allocation5 + $0x80] sm:$0xff]
    %v448 = vld [vmem:[#allocation5 + $0x88] sm:$0xff]
    %v449 = vld [vmem:[#allocation5 + $0x90] sm:$0xff]
    %v450 = vld [vmem:[#allocation5 + $0x98] sm:$0xff]
    %v451 = vld [vmem:[#allocation5 + $0xa0] sm:$0xff]
    %v452 = vld [vmem:[#allocation5 + $0xa8] sm:$0xff]
    %v453 = vld [vmem:[#allocation5 + $0xb0] sm:$0xff]
    %v454 = vld [vmem:[#allocation5 + $0xb8] sm:$0xff]
    %v455 = vld [vmem:[#allocation5 + $0xc0] sm:$0xff]
    %v456 = vld [vmem:[#allocation5 + $0xc8] sm:$0xff]
    %v457 = vld [vmem:[#allocation5 + $0xd0] sm:$0xff]
    %v458 = vld [vmem:[#allocation5 + $0xd8] sm:$0xff]
    %v459 = vld [vmem:[#allocation5 + $0xe0] sm:$0xff]
    %v460 = vld [vmem:[#allocation5 + $0xe8] sm:$0xff]
    %v461 = vld [vmem:[#allocation5 + $0xf0] sm:$0xff]
    %v462 = vld [vmem:[#allocation5 + $0xf8] sm:$0xff]
    %v463 = vld [vmem:[%s6] sm:$0x3]
    %v465 = vlaneseq
    %v466 = vshrl.u32 %v465, 7
    %v467 = vsub.s32 0, %v466
    %v468 = vrot.slane %v463, %v467
    %v469 = vlaneseq
    %v470 = vshrl.u32 %v469, 7
    %v471 = vsub.s32 1, %v470
    %v472 = vrot.slane %v463, %v471
    %v507 = vunpack.c.l.b16 %v431
    %v508 = vunpack.c.h.b16 %v431
    %v509 = vunpack.c.l.b16 %v432
    %v510 = vunpack.c.h.b16 %v432
    %v511 = vunpack.c.l.b16 %v433
    %v512 = vunpack.c.h.b16 %v433
    %v513 = vunpack.c.l.b16 %v434
    %v514 = vunpack.c.h.b16 %v434
    %v515 = vunpack.c.l.b16 %v435
    %v516 = vunpack.c.h.b16 %v435
    %v517 = vunpack.c.l.b16 %v436
    %v518 = vunpack.c.h.b16 %v436
    %v519 = vunpack.c.l.b16 %v437
    %v520 = vunpack.c.h.b16 %v437
    %v521 = vunpack.c.l.b16 %v438
    %v522 = vunpack.c.h.b16 %v438
    %v523 = vunpack.c.l.b16 %v439
    %v524 = vunpack.c.h.b16 %v439
    %v525 = vunpack.c.l.b16 %v440
    %v526 = vunpack.c.h.b16 %v440
    %v527 = vunpack.c.l.b16 %v441
    %v528 = vunpack.c.h.b16 %v441
    %v529 = vunpack.c.l.b16 %v442
    %v530 = vunpack.c.h.b16 %v442
    %v531 = vunpack.c.l.b16 %v443
    %v532 = vunpack.c.h.b16 %v443
    %v533 = vunpack.c.l.b16 %v444
    %v534 = vunpack.c.h.b16 %v444
    %v535 = vunpack.c.l.b16 %v445
    %v536 = vunpack.c.h.b16 %v445
    %v537 = vunpack.c.l.b16 %v446
    %v538 = vunpack.c.h.b16 %v446
    %v539 = vunpack.c.l.b16 %v447
    %v540 = vunpack.c.h.b16 %v447
    %v541 = vunpack.c.l.b16 %v448
    %v542 = vunpack.c.h.b16 %v448
    %v543 = vunpack.c.l.b16 %v449
    %v544 = vunpack.c.h.b16 %v449
    %v545 = vunpack.c.l.b16 %v450
    %v546 = vunpack.c.h.b16 %v450
    %v547 = vunpack.c.l.b16 %v451
    %v548 = vunpack.c.h.b16 %v451
    %v549 = vunpack.c.l.b16 %v452
    %v550 = vunpack.c.h.b16 %v452
    %v551 = vunpack.c.l.b16 %v453
    %v552 = vunpack.c.h.b16 %v453
    %v553 = vunpack.c.l.b16 %v454
    %v554 = vunpack.c.h.b16 %v454
    %v555 = vunpack.c.l.b16 %v455
    %v556 = vunpack.c.h.b16 %v455
    %v557 = vunpack.c.l.b16 %v456
    %v558 = vunpack.c.h.b16 %v456
    %v559 = vunpack.c.l.b16 %v457
    %v560 = vunpack.c.h.b16 %v457
    %v561 = vunpack.c.l.b16 %v458
    %v562 = vunpack.c.h.b16 %v458
    %v563 = vunpack.c.l.b16 %v459
    %v564 = vunpack.c.h.b16 %v459
    %v565 = vunpack.c.l.b16 %v460
    %v566 = vunpack.c.h.b16 %v460
    %v567 = vunpack.c.l.b16 %v461
    %v568 = vunpack.c.h.b16 %v461
    %v569 = vunpack.c.l.b16 %v462
    %v570 = vunpack.c.h.b16 %v462
    %v571 = vpack.c.b16 %v509, %v507
    %v572 = vpack.c.b16 %v510, %v508
    %v573 = vpack.c.b16 %v513, %v511
    %v574 = vpack.c.b16 %v514, %v512
    %v575 = vpack.c.b16 %v517, %v515
    %v576 = vpack.c.b16 %v518, %v516
    %v577 = vpack.c.b16 %v521, %v519
    %v578 = vpack.c.b16 %v522, %v520
    %v579 = vpack.c.b16 %v525, %v523
    %v580 = vpack.c.b16 %v526, %v524
    %v581 = vpack.c.b16 %v529, %v527
    %v582 = vpack.c.b16 %v530, %v528
    %v583 = vpack.c.b16 %v533, %v531
    %v584 = vpack.c.b16 %v534, %v532
    %v585 = vpack.c.b16 %v537, %v535
    %v586 = vpack.c.b16 %v538, %v536
    %v587 = vpack.c.b16 %v541, %v539
    %v588 = vpack.c.b16 %v542, %v540
    %v589 = vpack.c.b16 %v545, %v543
    %v590 = vpack.c.b16 %v546, %v544
    %v591 = vpack.c.b16 %v549, %v547
    %v592 = vpack.c.b16 %v550, %v548
    %v593 = vpack.c.b16 %v553, %v551
    %v594 = vpack.c.b16 %v554, %v552
    %v595 = vpack.c.b16 %v557, %v555
    %v596 = vpack.c.b16 %v558, %v556
    %v597 = vpack.c.b16 %v561, %v559
    %v598 = vpack.c.b16 %v562, %v560
    %v599 = vpack.c.b16 %v565, %v563
    %v600 = vpack.c.b16 %v566, %v564
    %v601 = vpack.c.b16 %v569, %v567
    %v602 = vpack.c.b16 %v570, %v568
    %635 = vmatprep.subr.bf16.mxu0 %v572
    %636 = vmatpush1.bf16.msra.mxu0 %v571
    %637 = vmatprep.subr.bf16.mxu0 %v574
    %638 = vmatpush1.bf16.msra.mxu0 %v573
    %639 = vmatprep.subr.bf16.mxu0 %v576
    %640 = vmatpush1.bf16.msra.mxu0 %v575
    %641 = vmatprep.subr.bf16.mxu0 %v578
    %642 = vmatpush1.bf16.msra.mxu0 %v577
    %643 = vmatprep.subr.bf16.mxu0 %v580
    %644 = vmatpush1.bf16.msra.mxu0 %v579
    %645 = vmatprep.subr.bf16.mxu0 %v582
    %646 = vmatpush1.bf16.msra.mxu0 %v581
    %647 = vmatprep.subr.bf16.mxu0 %v584
    %648 = vmatpush1.bf16.msra.mxu0 %v583
    %649 = vmatprep.subr.bf16.mxu0 %v586
    %650 = vmatpush1.bf16.msra.mxu0 %v585
    %651 = vmatprep.subr.bf16.mxu0 %v588
    %652 = vmatpush1.bf16.msra.mxu0 %v587
    %653 = vmatprep.subr.bf16.mxu0 %v590
    %654 = vmatpush1.bf16.msra.mxu0 %v589
    %655 = vmatprep.subr.bf16.mxu0 %v592
    %656 = vmatpush1.bf16.msra.mxu0 %v591
    %657 = vmatprep.subr.bf16.mxu0 %v594
    %658 = vmatpush1.bf16.msra.mxu0 %v593
    %659 = vmatprep.subr.bf16.mxu0 %v596
    %660 = vmatpush1.bf16.msra.mxu0 %v595
    %661 = vmatprep.subr.bf16.mxu0 %v598
    %662 = vmatpush1.bf16.msra.mxu0 %v597
    %663 = vmatprep.subr.bf16.mxu0 %v600
    %664 = vmatpush1.bf16.msra.mxu0 %v599
    %665 = vmatprep.subr.bf16.mxu0 %v602
    %666 = vmatpush1.bf16.msra.mxu0 %v601
    %667 = vmatprep.mubr.bf16.mxu0 %v430
    %668 = vmatmul.mubr.bf16.gmra.mrb[0].mxu0 %v429
    %v669 = vpop.f32.mrb[0].mxu0
    %v670 = vadd.f32 %v468, %v669
    %v671 = vpop.f32.mrb[0].mxu0
    %v672 = vadd.f32 %v472, %v671
    %v673 = vpop.f32.mrb[0].mxu0
    %v674 = vpop.f32.mrb[0].mxu0
    %675 = vdwg.mxu0
    %v676 = vmax.f32 %v670, 0.0
    %v677 = vmax.f32 %v672, 0.0
    %v678 = vpack.c.bf16 %v676, %v676
    %v679 = vpack.c.bf16 %v677, %v677
    %v680 = vld [vmem:[#allocation7] sm:$0xff]
    %v681 = vld [vmem:[#allocation7 + $0x8] sm:$0xff]
    %v682 = vld [vmem:[#allocation7 + $0x10] sm:$0xff]
    %v683 = vld [vmem:[#allocation7 + $0x18] sm:$0xff]
    %v684 = vld [vmem:[#allocation7 + $0x20] sm:$0xff]
    %v685 = vld [vmem:[#allocation7 + $0x28] sm:$0xff]
    %v686 = vld [vmem:[#allocation7 + $0x30] sm:$0xff]
    %v687 = vld [vmem:[#allocation7 + $0x38] sm:$0xff]
    %v688 = vld [vmem:[#allocation7 + $0x40] sm:$0xff]
    %v689 = vld [vmem:[#allocation7 + $0x48] sm:$0xff]
    %v690 = vld [vmem:[#allocation7 + $0x50] sm:$0xff]
    %v691 = vld [vmem:[#allocation7 + $0x58] sm:$0xff]
    %v692 = vld [vmem:[#allocation7 + $0x60] sm:$0xff]
    %v693 = vld [vmem:[#allocation7 + $0x68] sm:$0xff]
    %v694 = vld [vmem:[#allocation7 + $0x70] sm:$0xff]
    %v695 = vld [vmem:[#allocation7 + $0x78] sm:$0xff]
    %v696 = vld [vmem:[#allocation7 + $0x80] sm:$0xff]
    %v697 = vld [vmem:[#allocation7 + $0x88] sm:$0xff]
    %v698 = vld [vmem:[#allocation7 + $0x90] sm:$0xff]
    %v699 = vld [vmem:[#allocation7 + $0x98] sm:$0xff]
    %v700 = vld [vmem:[#allocation7 + $0xa0] sm:$0xff]
    %v701 = vld [vmem:[#allocation7 + $0xa8] sm:$0xff]
    %v702 = vld [vmem:[#allocation7 + $0xb0] sm:$0xff]
    %v703 = vld [vmem:[#allocation7 + $0xb8] sm:$0xff]
    %v704 = vld [vmem:[#allocation7 + $0xc0] sm:$0xff]
    %v705 = vld [vmem:[#allocation7 + $0xc8] sm:$0xff]
    %v706 = vld [vmem:[#allocation7 + $0xd0] sm:$0xff]
    %v707 = vld [vmem:[#allocation7 + $0xd8] sm:$0xff]
    %v708 = vld [vmem:[#allocation7 + $0xe0] sm:$0xff]
    %v709 = vld [vmem:[#allocation7 + $0xe8] sm:$0xff]
    %v710 = vld [vmem:[#allocation7 + $0xf0] sm:$0xff]
    %v711 = vld [vmem:[#allocation7 + $0xf8] sm:$0xff]
    %v712 = vld [vmem:[%s8] sm:$0x3]
    %v714 = vlaneseq
    %v715 = vshrl.u32 %v714, 7
    %v716 = vsub.s32 0, %v715
    %v717 = vrot.slane %v712, %v716
    %v718 = vlaneseq
    %v719 = vshrl.u32 %v718, 7
    %v720 = vsub.s32 1, %v719
    %v721 = vrot.slane %v712, %v720
    %v756 = vunpack.c.l.b16 %v680
    %v757 = vunpack.c.h.b16 %v680
    %v758 = vunpack.c.l.b16 %v681
    %v759 = vunpack.c.h.b16 %v681
    %v760 = vunpack.c.l.b16 %v682
    %v761 = vunpack.c.h.b16 %v682
    %v762 = vunpack.c.l.b16 %v683
    %v763 = vunpack.c.h.b16 %v683
    %v764 = vunpack.c.l.b16 %v684
    %v765 = vunpack.c.h.b16 %v684
    %v766 = vunpack.c.l.b16 %v685
    %v767 = vunpack.c.h.b16 %v685
    %v768 = vunpack.c.l.b16 %v686
    %v769 = vunpack.c.h.b16 %v686
    %v770 = vunpack.c.l.b16 %v687
    %v771 = vunpack.c.h.b16 %v687
    %v772 = vunpack.c.l.b16 %v688
    %v773 = vunpack.c.h.b16 %v688
    %v774 = vunpack.c.l.b16 %v689
    %v775 = vunpack.c.h.b16 %v689
    %v776 = vunpack.c.l.b16 %v690
    %v777 = vunpack.c.h.b16 %v690
    %v778 = vunpack.c.l.b16 %v691
    %v779 = vunpack.c.h.b16 %v691
    %v780 = vunpack.c.l.b16 %v692
    %v781 = vunpack.c.h.b16 %v692
    %v782 = vunpack.c.l.b16 %v693
    %v783 = vunpack.c.h.b16 %v693
    %v784 = vunpack.c.l.b16 %v694
    %v785 = vunpack.c.h.b16 %v694
    %v786 = vunpack.c.l.b16 %v695
    %v787 = vunpack.c.h.b16 %v695
    %v788 = vunpack.c.l.b16 %v696
    %v789 = vunpack.c.h.b16 %v696
    %v790 = vunpack.c.l.b16 %v697
    %v791 = vunpack.c.h.b16 %v697
    %v792 = vunpack.c.l.b16 %v698
    %v793 = vunpack.c.h.b16 %v698
    %v794 = vunpack.c.l.b16 %v699
    %v795 = vunpack.c.h.b16 %v699
    %v796 = vunpack.c.l.b16 %v700
    %v797 = vunpack.c.h.b16 %v700
    %v798 = vunpack.c.l.b16 %v701
    %v799 = vunpack.c.h.b16 %v701
    %v800 = vunpack.c.l.b16 %v702
    %v801 = vunpack.c.h.b16 %v702
    %v802 = vunpack.c.l.b16 %v703
    %v803 = vunpack.c.h.b16 %v703
    %v804 = vunpack.c.l.b16 %v704
    %v805 = vunpack.c.h.b16 %v704
    %v806 = vunpack.c.l.b16 %v705
    %v807 = vunpack.c.h.b16 %v705
    %v808 = vunpack.c.l.b16 %v706
    %v809 = vunpack.c.h.b16 %v706
    %v810 = vunpack.c.l.b16 %v707
    %v811 = vunpack.c.h.b16 %v707
    %v812 = vunpack.c.l.b16 %v708
    %v813 = vunpack.c.h.b16 %v708
    %v814 = vunpack.c.l.b16 %v709
    %v815 = vunpack.c.h.b16 %v709
    %v816 = vunpack.c.l.b16 %v710
    %v817 = vunpack.c.h.b16 %v710
    %v818 = vunpack.c.l.b16 %v711
    %v819 = vunpack.c.h.b16 %v711
    %v820 = vpack.c.b16 %v758, %v756
    %v821 = vpack.c.b16 %v759, %v757
    %v822 = vpack.c.b16 %v762, %v760
    %v823 = vpack.c.b16 %v763, %v761
    %v824 = vpack.c.b16 %v766, %v764
    %v825 = vpack.c.b16 %v767, %v765
    %v826 = vpack.c.b16 %v770, %v768
    %v827 = vpack.c.b16 %v771, %v769
    %v828 = vpack.c.b16 %v774, %v772
    %v829 = vpack.c.b16 %v775, %v773
    %v830 = vpack.c.b16 %v778, %v776
    %v831 = vpack.c.b16 %v779, %v777
    %v832 = vpack.c.b16 %v782, %v780
    %v833 = vpack.c.b16 %v783, %v781
    %v834 = vpack.c.b16 %v786, %v784
    %v835 = vpack.c.b16 %v787, %v785
    %v836 = vpack.c.b16 %v790, %v788
    %v837 = vpack.c.b16 %v791, %v789
    %v838 = vpack.c.b16 %v794, %v792
    %v839 = vpack.c.b16 %v795, %v793
    %v840 = vpack.c.b16 %v798, %v796
    %v841 = vpack.c.b16 %v799, %v797
    %v842 = vpack.c.b16 %v802, %v800
    %v843 = vpack.c.b16 %v803, %v801
    %v844 = vpack.c.b16 %v806, %v804
    %v845 = vpack.c.b16 %v807, %v805
    %v846 = vpack.c.b16 %v810, %v808
    %v847 = vpack.c.b16 %v811, %v809
    %v848 = vpack.c.b16 %v814, %v812
    %v849 = vpack.c.b16 %v815, %v813
    %v850 = vpack.c.b16 %v818, %v816
    %v851 = vpack.c.b16 %v819, %v817
    %884 = vmatprep.subr.bf16.mxu0 %v821
    %885 = vmatpush1.bf16.msra.mxu0 %v820
    %886 = vmatprep.subr.bf16.mxu0 %v823
    %887 = vmatpush1.bf16.msra.mxu0 %v822
    %888 = vmatprep.subr.bf16.mxu0 %v825
    %889 = vmatpush1.bf16.msra.mxu0 %v824
    %890 = vmatprep.subr.bf16.mxu0 %v827
    %891 = vmatpush1.bf16.msra.mxu0 %v826
    %892 = vmatprep.subr.bf16.mxu0 %v829
    %893 = vmatpush1.bf16.msra.mxu0 %v828
    %894 = vmatprep.subr.bf16.mxu0 %v831
    %895 = vmatpush1.bf16.msra.mxu0 %v830
    %896 = vmatprep.subr.bf16.mxu0 %v833
    %897 = vmatpush1.bf16.msra.mxu0 %v832
    %898 = vmatprep.subr.bf16.mxu0 %v835
    %899 = vmatpush1.bf16.msra.mxu0 %v834
    %900 = vmatprep.subr.bf16.mxu0 %v837
    %901 = vmatpush1.bf16.msra.mxu0 %v836
    %902 = vmatprep.subr.bf16.mxu0 %v839
    %903 = vmatpush1.bf16.msra.mxu0 %v838
    %904 = vmatprep.subr.bf16.mxu0 %v841
    %905 = vmatpush1.bf16.msra.mxu0 %v840
    %906 = vmatprep.subr.bf16.mxu0 %v843
    %907 = vmatpush1.bf16.msra.mxu0 %v842
    %908 = vmatprep.subr.bf16.mxu0 %v845
    %909 = vmatpush1.bf16.msra.mxu0 %v844
    %910 = vmatprep.subr.bf16.mxu0 %v847
    %911 = vmatpush1.bf16.msra.mxu0 %v846
    %912 = vmatprep.subr.bf16.mxu0 %v849
    %913 = vmatpush1.bf16.msra.mxu0 %v848
    %914 = vmatprep.subr.bf16.mxu0 %v851
    %915 = vmatpush1.bf16.msra.mxu0 %v850
    %916 = vmatprep.mubr.bf16.mxu0 %v679
    %917 = vmatmul.mubr.bf16.gmra.mrb[0].mxu0 %v678
    %v918 = vpop.f32.mrb[0].mxu0
    %v919 = vadd.f32 %v717, %v918
    %v920 = vpop.f32.mrb[0].mxu0
    %v921 = vadd.f32 %v721, %v920
    %v922 = vpop.f32.mrb[0].mxu0
    %v923 = vpop.f32.mrb[0].mxu0
    %924 = vdwg.mxu0
    %v925 = vmax.f32 %v919, 0.0
    %v926 = vmax.f32 %v921, 0.0
    %v927 = vpack.c.bf16 %v925, %v925
    %v928 = vpack.c.bf16 %v926, %v926
    %v929 = vld [vmem:[#allocation8] sm:$0xff]
    %v930 = vld [vmem:[#allocation8 + $0x8] sm:$0xff]
    %v931 = vld [vmem:[#allocation8 + $0x10] sm:$0xff]
    %v932 = vld [vmem:[#allocation8 + $0x18] sm:$0xff]
    %v933 = vld [vmem:[#allocation8 + $0x20] sm:$0xff]
    %v934 = vld [vmem:[#allocation8 + $0x28] sm:$0xff]
    %v935 = vld [vmem:[#allocation8 + $0x30] sm:$0xff]
    %v936 = vld [vmem:[#allocation8 + $0x38] sm:$0xff]
    %v937 = vld [vmem:[#allocation8 + $0x40] sm:$0xff]
    %v938 = vld [vmem:[#allocation8 + $0x48] sm:$0xff]
    %v939 = vld [vmem:[#allocation8 + $0x50] sm:$0xff]
    %v940 = vld [vmem:[#allocation8 + $0x58] sm:$0xff]
    %v941 = vld [vmem:[#allocation8 + $0x60] sm:$0xff]
    %v942 = vld [vmem:[#allocation8 + $0x68] sm:$0xff]
    %v943 = vld [vmem:[#allocation8 + $0x70] sm:$0xff]
    %v944 = vld [vmem:[#allocation8 + $0x78] sm:$0xff]
    %v945 = vld [vmem:[#allocation8 + $0x80] sm:$0xff]
    %v946 = vld [vmem:[#allocation8 + $0x88] sm:$0xff]
    %v947 = vld [vmem:[#allocation8 + $0x90] sm:$0xff]
    %v948 = vld [vmem:[#allocation8 + $0x98] sm:$0xff]
    %v949 = vld [vmem:[#allocation8 + $0xa0] sm:$0xff]
    %v950 = vld [vmem:[#allocation8 + $0xa8] sm:$0xff]
    %v951 = vld [vmem:[#allocation8 + $0xb0] sm:$0xff]
    %v952 = vld [vmem:[#allocation8 + $0xb8] sm:$0xff]
    %v953 = vld [vmem:[#allocation8 + $0xc0] sm:$0xff]
    %v954 = vld [vmem:[#allocation8 + $0xc8] sm:$0xff]
    %v955 = vld [vmem:[#allocation8 + $0xd0] sm:$0xff]
    %v956 = vld [vmem:[#allocation8 + $0xd8] sm:$0xff]
    %v957 = vld [vmem:[#allocation8 + $0xe0] sm:$0xff]
    %v958 = vld [vmem:[#allocation8 + $0xe8] sm:$0xff]
    %v959 = vld [vmem:[#allocation8 + $0xf0] sm:$0xff]
    %v960 = vld [vmem:[#allocation8 + $0xf8] sm:$0xff]
    %v961 = vld [vmem:[%s10] sm:$0x3]
    %v963 = vlaneseq
    %v964 = vshrl.u32 %v963, 7
    %v965 = vsub.s32 0, %v964
    %v966 = vrot.slane %v961, %v965
    %v967 = vlaneseq
    %v968 = vshrl.u32 %v967, 7
    %v969 = vsub.s32 1, %v968
    %v970 = vrot.slane %v961, %v969
    %v1005 = vunpack.c.l.b16 %v929
    %v1006 = vunpack.c.h.b16 %v929
    %v1007 = vunpack.c.l.b16 %v930
    %v1008 = vunpack.c.h.b16 %v930
    %v1009 = vunpack.c.l.b16 %v931
    %v1010 = vunpack.c.h.b16 %v931
    %v1011 = vunpack.c.l.b16 %v932
    %v1012 = vunpack.c.h.b16 %v932
    %v1013 = vunpack.c.l.b16 %v933
    %v1014 = vunpack.c.h.b16 %v933
    %v1015 = vunpack.c.l.b16 %v934
    %v1016 = vunpack.c.h.b16 %v934
    %v1017 = vunpack.c.l.b16 %v935
    %v1018 = vunpack.c.h.b16 %v935
    %v1019 = vunpack.c.l.b16 %v936
    %v1020 = vunpack.c.h.b16 %v936
    %v1021 = vunpack.c.l.b16 %v937
    %v1022 = vunpack.c.h.b16 %v937
    %v1023 = vunpack.c.l.b16 %v938
    %v1024 = vunpack.c.h.b16 %v938
    %v1025 = vunpack.c.l.b16 %v939
    %v1026 = vunpack.c.h.b16 %v939
    %v1027 = vunpack.c.l.b16 %v940
    %v1028 = vunpack.c.h.b16 %v940
    %v1029 = vunpack.c.l.b16 %v941
    %v1030 = vunpack.c.h.b16 %v941
    %v1031 = vunpack.c.l.b16 %v942
    %v1032 = vunpack.c.h.b16 %v942
    %v1033 = vunpack.c.l.b16 %v943
    %v1034 = vunpack.c.h.b16 %v943
    %v1035 = vunpack.c.l.b16 %v944
    %v1036 = vunpack.c.h.b16 %v944
    %v1037 = vunpack.c.l.b16 %v945
    %v1038 = vunpack.c.h.b16 %v945
    %v1039 = vunpack.c.l.b16 %v946
    %v1040 = vunpack.c.h.b16 %v946
    %v1041 = vunpack.c.l.b16 %v947
    %v1042 = vunpack.c.h.b16 %v947
    %v1043 = vunpack.c.l.b16 %v948
    %v1044 = vunpack.c.h.b16 %v948
    %v1045 = vunpack.c.l.b16 %v949
    %v1046 = vunpack.c.h.b16 %v949
    %v1047 = vunpack.c.l.b16 %v950
    %v1048 = vunpack.c.h.b16 %v950
    %v1049 = vunpack.c.l.b16 %v951
    %v1050 = vunpack.c.h.b16 %v951
    %v1051 = vunpack.c.l.b16 %v952
    %v1052 = vunpack.c.h.b16 %v952
    %v1053 = vunpack.c.l.b16 %v953
    %v1054 = vunpack.c.h.b16 %v953
    %v1055 = vunpack.c.l.b16 %v954
    %v1056 = vunpack.c.h.b16 %v954
    %v1057 = vunpack.c.l.b16 %v955
    %v1058 = vunpack.c.h.b16 %v955
    %v1059 = vunpack.c.l.b16 %v956
    %v1060 = vunpack.c.h.b16 %v956
    %v1061 = vunpack.c.l.b16 %v957
    %v1062 = vunpack.c.h.b16 %v957
    %v1063 = vunpack.c.l.b16 %v958
    %v1064 = vunpack.c.h.b16 %v958
    %v1065 = vunpack.c.l.b16 %v959
    %v1066 = vunpack.c.h.b16 %v959
    %v1067 = vunpack.c.l.b16 %v960
    %v1068 = vunpack.c.h.b16 %v960
    %v1069 = vpack.c.b16 %v1007, %v1005
    %v1070 = vpack.c.b16 %v1008, %v1006
    %v1071 = vpack.c.b16 %v1011, %v1009
    %v1072 = vpack.c.b16 %v1012, %v1010
    %v1073 = vpack.c.b16 %v1015, %v1013
    %v1074 = vpack.c.b16 %v1016, %v1014
    %v1075 = vpack.c.b16 %v1019, %v1017
    %v1076 = vpack.c.b16 %v1020, %v1018
    %v1077 = vpack.c.b16 %v1023, %v1021
    %v1078 = vpack.c.b16 %v1024, %v1022
    %v1079 = vpack.c.b16 %v1027, %v1025
    %v1080 = vpack.c.b16 %v1028, %v1026
    %v1081 = vpack.c.b16 %v1031, %v1029
    %v1082 = vpack.c.b16 %v1032, %v1030
    %v1083 = vpack.c.b16 %v1035, %v1033
    %v1084 = vpack.c.b16 %v1036, %v1034
    %v1085 = vpack.c.b16 %v1039, %v1037
    %v1086 = vpack.c.b16 %v1040, %v1038
    %v1087 = vpack.c.b16 %v1043, %v1041
    %v1088 = vpack.c.b16 %v1044, %v1042
    %v1089 = vpack.c.b16 %v1047, %v1045
    %v1090 = vpack.c.b16 %v1048, %v1046
    %v1091 = vpack.c.b16 %v1051, %v1049
    %v1092 = vpack.c.b16 %v1052, %v1050
    %v1093 = vpack.c.b16 %v1055, %v1053
    %v1094 = vpack.c.b16 %v1056, %v1054
    %v1095 = vpack.c.b16 %v1059, %v1057
    %v1096 = vpack.c.b16 %v1060, %v1058
    %v1097 = vpack.c.b16 %v1063, %v1061
    %v1098 = vpack.c.b16 %v1064, %v1062
    %v1099 = vpack.c.b16 %v1067, %v1065
    %v1100 = vpack.c.b16 %v1068, %v1066
    %1133 = vmatprep.subr.bf16.mxu0 %v1070
    %1134 = vmatpush1.bf16.msra.mxu0 %v1069
    %1135 = vmatprep.subr.bf16.mxu0 %v1072
    %1136 = vmatpush1.bf16.msra.mxu0 %v1071
    %1137 = vmatprep.subr.bf16.mxu0 %v1074
    %1138 = vmatpush1.bf16.msra.mxu0 %v1073
    %1139 = vmatprep.subr.bf16.mxu0 %v1076
    %1140 = vmatpush1.bf16.msra.mxu0 %v1075
    %1141 = vmatprep.subr.bf16.mxu0 %v1078
    %1142 = vmatpush1.bf16.msra.mxu0 %v1077
    %1143 = vmatprep.subr.bf16.mxu0 %v1080
    %1144 = vmatpush1.bf16.msra.mxu0 %v1079
    %1145 = vmatprep.subr.bf16.mxu0 %v1082
    %1146 = vmatpush1.bf16.msra.mxu0 %v1081
    %1147 = vmatprep.subr.bf16.mxu0 %v1084
    %1148 = vmatpush1.bf16.msra.mxu0 %v1083
    %1149 = vmatprep.subr.bf16.mxu0 %v1086
    %1150 = vmatpush1.bf16.msra.mxu0 %v1085
    %1151 = vmatprep.subr.bf16.mxu0 %v1088
    %1152 = vmatpush1.bf16.msra.mxu0 %v1087
    %1153 = vmatprep.subr.bf16.mxu0 %v1090
    %1154 = vmatpush1.bf16.msra.mxu0 %v1089
    %1155 = vmatprep.subr.bf16.mxu0 %v1092
    %1156 = vmatpush1.bf16.msra.mxu0 %v1091
    %1157 = vmatprep.subr.bf16.mxu0 %v1094
    %1158 = vmatpush1.bf16.msra.mxu0 %v1093
    %1159 = vmatprep.subr.bf16.mxu0 %v1096
    %1160 = vmatpush1.bf16.msra.mxu0 %v1095
    %1161 = vmatprep.subr.bf16.mxu0 %v1098
    %1162 = vmatpush1.bf16.msra.mxu0 %v1097
    %1163 = vmatprep.subr.bf16.mxu0 %v1100
    %1164 = vmatpush1.bf16.msra.mxu0 %v1099
    %1165 = vmatprep.mubr.bf16.mxu0 %v928
    %1166 = vmatmul.mubr.bf16.gmra.mrb[0].mxu0 %v927
    %v1167 = vpop.f32.mrb[0].mxu0
    %v1168 = vadd.f32 %v966, %v1167
    %v1169 = vpop.f32.mrb[0].mxu0
    %v1170 = vadd.f32 %v970, %v1169
    %v1171 = vpop.f32.mrb[0].mxu0
    %v1172 = vpop.f32.mrb[0].mxu0
    %1173 = vdwg.mxu0
    %v1174 = vmax.f32 %v1168, 0.0
    %v1175 = vmax.f32 %v1170, 0.0
    %v1176 = vpack.c.bf16 %v1174, %v1174
    %v1177 = vpack.c.bf16 %v1175, %v1175
    %v1178 = vunpack.c.l.bf16 %v1176
    %v1179 = vunpack.c.l.bf16 %v1177
    %v1180 = vld [vmem:[%s11] sm:$0x3]
    %v1182 = vlaneseq
    %v1183 = vshrl.u32 %v1182, 7
    %v1184 = vsub.s32 0, %v1183
    %v1185 = vrot.slane %v1180, %v1184
    %v1186 = vlaneseq
    %v1187 = vshrl.u32 %v1186, 7
    %v1188 = vsub.s32 1, %v1187
    %v1189 = vrot.slane %v1180, %v1188
    %v1192 = vmul.f32 %v1178, %v1185
    %v1193 = vmul.f32 %v1179, %v1189
    %v1194 = vadd.f32 %v1192, %v1193
    %1195 = vadd.xlane.f32.xlu0 %v1194
    %v1196 = vpop.xlane.xlu0 %1195
    %v1197 = vld [vmem:[#allocation2] sm:$0x1]
    %v1199 = vlaneseq
    %v1200 = vshrl.u32 %v1199, 7
    %v1201 = vsub.s32 0, %v1200
    %v1202 = vrot.slane %v1197, %v1201
    %v1204 = vadd.f32 %v1196, %v1202
    %vm1205 = vcmask 7168
    %1206 = vst.msk [vmem:[%s13] sm:$0xff] %vm1205, %v1204
    // Predicated region
    $region70: #{tpu_custom_call.1} parent=1 // pred_check
      _
    $region71: #{tpu_custom_call.1} parent=1 // pred_check_branch
      %1208 = sbr.rel (0) target = $region73
    $region72: #{tpu_custom_call.1} parent=1 // pred_region
      _
    $region73: #{tpu_custom_call.1} parent=1 // pred_fallthru
      _
    // Predicated region
    $region74: #{tpu_custom_call.1} parent=1 // pred_check
      _
    $region75: #{tpu_custom_call.1} parent=1 // pred_check_branch
      %1210 = sbr.rel (0) target = $region77
    $region76: #{tpu_custom_call.1} parent=1 // pred_region
      _
    $region77: #{tpu_custom_call.1} parent=1 // pred_fallthru
      _
    %1211 = vsyncpa [#allocation4], 1
    %1212 = vsyncpa [#allocation6], 1
    %1213 = vsyncpa [#allocation9], 1

</llo_original>
